<compile_context>
chip_gen: v7x
topology: tpu7x:2x2x1
jax: 0.10.0
libtpu: 0.0.40
codegen_flags: <defaults>
</compile_context>

<pallas_src>
import functools

import jax
import jax.numpy as jnp
import numpy as np
from jax import lax
from jax.experimental import pallas as pl
from jax.experimental.pallas import tpu as pltpu


_CLASS_CHUNK = 512          # lanes per in-kernel class chunk (multiple of 128)
_DIRECT_PATH_MAX_C = 1024   # at/below this, full-tile temporaries are cheap enough


def _round_up(x: int, m: int) -> int:
    return ((x + m - 1) // m) * m


def _vmem_capacity_bytes() -> int:
    """Physical per-TensorCore VMEM; conservative (v7x-sized) fallback if unavailable."""
    try:
        return int(pltpu.get_tpu_info().vmem_capacity_bytes)
    except Exception:
        return 64 * 1024 * 1024


def _dimension_semantics(num_tiles: int):
    """v7x has 2 TensorCores/chip: shard the batch grid axis across them explicitly.

    v5e/v6e (1 TC) keep plain "parallel" (near-zero codegen effect, but harmless)."""
    try:
        kind = jax.devices()[0].device_kind.lower()
    except Exception:
        kind = ""
    if "v7" in kind and num_tiles >= 2:
        return (pltpu.CORE_PARALLEL,)
    return ("parallel",)


def _choose_batch_tile(batch: int, num_classes: int, in_itemsize: int,
                       budget_bytes: int, class_chunk) -> int:
    """Largest batch tile fitting the per-TensorCore VMEM budget.

    Per-row cost model:
      2 inputs x 2 pipeline buffers x C x itemsize       (auto-pipelined DMA buffers)
    + ~7 full-width f32 temporaries  (direct path)   or
    + ~6 chunk-width f32 temporaries (class-chunked path).
    """
    if class_chunk is None:
        tmp_bytes = 7 * num_classes * 4
    else:
        tmp_bytes = 6 * class_chunk * 4 + 64
    per_row = 4 * num_classes * in_itemsize + tmp_bytes
    tile = budget_bytes // per_row
    align = 16 if in_itemsize < 4 else 8        # sublane packing for 16-bit inputs
    tile = (tile // align) * align
    tile = max(align, min(tile, 1024))          # >=512 rows already ~85% of HBM roofline
    tile = min(tile, _round_up(batch, align))   # never exceed the (aligned-up) batch
    return int(tile)


def _distill_kl_kernel(ys_ref, yt_ref, out_ref, *, inv_t, nvalid_last, class_chunk):
    tb, num_classes = ys_ref.shape
    f32 = jnp.float32

    if class_chunk is None or class_chunk >= num_classes:
        # ---- direct path: whole (tb, C) tile at once --------------------------------
        ys = ys_ref[...]
        yt = yt_ref[...]
        # Row maxes on the raw input dtype (exact; bf16 halves XLU passes);
        # 1/T folded into the shifted subtract.
        m_s = jnp.max(ys, axis=1, keepdims=True).astype(f32)
        m_t = jnp.max(yt, axis=1, keepdims=True).astype(f32)
        ys_sh = (ys.astype(f32) - m_s) * inv_t
        yt_sh = (yt.astype(f32) - m_t) * inv_t
        yt_exp = jnp.exp(yt_sh)
        l_s = jnp.sum(jnp.exp(ys_sh), axis=1, keepdims=True)                  # (tb, 1)
        l_t = jnp.sum(yt_exp, axis=1, keepdims=True)                          # (tb, 1)
        cross = jnp.sum(yt_exp * (yt_sh - ys_sh), axis=1, keepdims=True)      # (tb, 1)
    else:
        # ---- class-chunked two-pass path: temporaries stay at chunk width -----------
        num_full = num_classes // class_chunk
        tail = num_classes - num_full * class_chunk
        unroll = bool(num_full <= 8)

        def _chunk(ref, c):
            col = pl.multiple_of(c * class_chunk, class_chunk)
            return ref[:, pl.ds(col, class_chunk)]

        # Pass 1: per-row maxes on the raw dtype.
        def max_body(c, carry):
            m_s_c, m_t_c = carry
            m_s_c = jnp.maximum(m_s_c, jnp.max(_chunk(ys_ref, c), axis=1, keepdims=True))
            m_t_c = jnp.maximum(m_t_c, jnp.max(_chunk(yt_ref, c), axis=1, keepdims=True))
            return m_s_c, m_t_c

        m_init = (jnp.full((tb, 1), -jnp.inf, ys_ref.dtype),
                  jnp.full((tb, 1), -jnp.inf, yt_ref.dtype))
        m_s_raw, m_t_raw = lax.fori_loop(0, num_full, max_body, m_init, unroll=unroll)
        if tail:
            ys_tail = ys_ref[:, pl.ds(num_full * class_chunk, tail)]
            yt_tail = yt_ref[:, pl.ds(num_full * class_chunk, tail)]
            m_s_raw = jnp.maximum(m_s_raw, jnp.max(ys_tail, axis=1, keepdims=True))
            m_t_raw = jnp.maximum(m_t_raw, jnp.max(yt_tail, axis=1, keepdims=True))
        m_s = m_s_raw.astype(f32)
        m_t = m_t_raw.astype(f32)

        # Pass 2: shifted exp sums + cross term, accumulated per chunk.
        def _contrib(ys_c_raw, yt_c_raw):
            ys_c = (ys_c_raw.astype(f32) - m_s) * inv_t
            yt_c = (yt_c_raw.astype(f32) - m_t) * inv_t
            e_t = jnp.exp(yt_c)
            return (jnp.sum(jnp.exp(ys_c), axis=1, keepdims=True),
                    jnp.sum(e_t, axis=1, keepdims=True),
                    jnp.sum(e_t * (yt_c - ys_c), axis=1, keepdims=True))

        def sum_body(c, carry):
            l_s_c, l_t_c, cr_c = carry
            d_ls, d_lt, d_cr = _contrib(_chunk(ys_ref, c), _chunk(yt_ref, c))
            return l_s_c + d_ls, l_t_c + d_lt, cr_c + d_cr

        zeros = jnp.zeros((tb, 1), f32)
        l_s, l_t, cross = lax.fori_loop(0, num_full, sum_body,
                                        (zeros, zeros, zeros), unroll=unroll)
        if tail:
            d_ls, d_lt, d_cr = _contrib(ys_tail, yt_tail)
            l_s, l_t, cross = l_s + d_ls, l_t + d_lt, cross + d_cr

    # KL_row = sum_c p_t * (log p_t - log p_s), algebraically simplified so no full-tile
    # p_t / log_p_t / log_p_s / kl temporaries are materialized.
    row_kl = cross / l_t - jnp.log(l_t) + jnp.log(l_s)                        # (tb, 1)

    if nvalid_last is None:
        out_ref[...] = row_kl
    else:
        is_last = pl.program_id(0) == pl.num_programs(0) - 1

        @pl.when(jnp.logical_not(is_last))
        def _():
            out_ref[...] = row_kl

        @pl.when(is_last)
        def _():
            # Rows past the true batch read uninitialized memory; SELECT them away
            # (never multiply-by-mask: that would propagate NaN/Inf into the sum).
            rows = lax.broadcasted_iota(jnp.int32, row_kl.shape, 0)
            out_ref[...] = jnp.where(rows < nvalid_last, row_kl, jnp.float32(0.0))


def distill_kl(y_s, y_t, temperature, *, batch_tile=None, class_chunk="auto"):
    """Pallas TPU implementation of DistillKL.forward(y_s, y_t)."""
    assert y_s.shape == y_t.shape and y_s.ndim == 2
    B, C = y_s.shape
    itemsize = max(jnp.dtype(y_s.dtype).itemsize, jnp.dtype(y_t.dtype).itemsize)

    if class_chunk == "auto":
        class_chunk = None if C <= _DIRECT_PATH_MAX_C else _CLASS_CHUNK

    vmem_bytes = _vmem_capacity_bytes()
    if batch_tile is None:
        # ~22 MiB budget on a 64 MiB (v7x) part, ~45 MiB on 128 MiB (v5e/v6e) parts.
        budget = (vmem_bytes * 35) // 100
        batch_tile = _choose_batch_tile(B, C, itemsize, budget, class_chunk)
    num_tiles = pl.cdiv(B, batch_tile)
    padded_b = num_tiles * batch_tile
    nvalid_last = None if padded_b == B else B - (num_tiles - 1) * batch_tile

    kernel = functools.partial(
        _distill_kl_kernel,
        inv_t=float(1.0 / float(temperature)),
        nvalid_last=nvalid_last,
        class_chunk=class_chunk,
    )

    per_row_kl = pl.pallas_call(
        kernel,
        out_shape=jax.ShapeDtypeStruct((padded_b, 1), jnp.float32),
        grid_spec=pltpu.PrefetchScalarGridSpec(
            num_scalar_prefetch=0,
            grid=(num_tiles,),
            in_specs=[
                pl.BlockSpec((batch_tile, C), lambda i: (i, 0)),
                pl.BlockSpec((batch_tile, C), lambda i: (i, 0)),
            ],
            out_specs=pl.BlockSpec((batch_tile, 1), lambda i: (i, 0)),
        ),
        compiler_params=pltpu.CompilerParams(
            dimension_semantics=_dimension_semantics(num_tiles),
            vmem_limit_bytes=int(min((vmem_bytes * 3) // 4, 100 * 1024 * 1024)),
        ),
    )(y_s, y_t)

    # Tiny final reduction + batchmean * T**2 scaling done in JAX (negligible traffic).
    return jnp.sum(per_row_kl) * jnp.float32(float(temperature) ** 2 / B)


def _distill_kl_reference(y_s, y_t, temperature):
    t = float(temperature)
    log_p_s = jax.nn.log_softmax(y_s.astype(jnp.float32) / t, axis=1)
    log_p_t = jax.nn.log_softmax(y_t.astype(jnp.float32) / t, axis=1)
    p_t = jnp.exp(log_p_t)
    kl = p_t * (log_p_t - log_p_s)
    return jnp.sum(kl) / y_s.shape[0] * (t ** 2)


if __name__ == "__main__":
    # DistillKL has no learned parameters; only the temperature hyper-parameter.
    T = 4.0
    key = jax.random.PRNGKey(0)
    k1, k2, k3, k4, k5, k6 = jax.random.split(key, 6)

    # Case 1: small ImageNet-style logits (f32, class dim not a multiple of 128); direct path.
    B, C = 16, 1000
    y_s = jax.random.normal(k1, (B, C), dtype=jnp.float32)
    y_t = jax.random.normal(k2, (B, C), dtype=jnp.float32)
    loss = jax.block_until_ready(distill_kl(y_s, y_t, T))
    ref = _distill_kl_reference(y_s, y_t, T)
    np.testing.assert_allclose(np.asarray(loss), np.asarray(ref), rtol=1e-4, atol=1e-5)

    # Case 2: bf16 logits, batch not a multiple of the tile (exercises last-tile masking).
    B2, C2 = 12, 384
    y_s2 = jax.random.normal(k3, (B2, C2), dtype=jnp.float32).astype(jnp.bfloat16)
    y_t2 = jax.random.normal(k4, (B2, C2), dtype=jnp.float32).astype(jnp.bfloat16)
    loss2 = jax.block_until_ready(distill_kl(y_s2, y_t2, T))
    ref2 = _distill_kl_reference(y_s2, y_t2, T)
    np.testing.assert_allclose(np.asarray(loss2), np.asarray(ref2), rtol=1e-4, atol=1e-5)

    # Case 3: larger class dim -> class-chunked two-pass path (5 full chunks + 256 tail),
    # bf16 inputs, batch not a multiple of the tile.
    B3, C3 = 24, 2816
    y_s3 = jax.random.normal(k5, (B3, C3), dtype=jnp.float32).astype(jnp.bfloat16)
    y_t3 = jax.random.normal(k6, (B3, C3), dtype=jnp.float32).astype(jnp.bfloat16)
    loss3 = jax.block_until_ready(distill_kl(y_s3, y_t3, T))
    ref3 = _distill_kl_reference(y_s3, y_t3, T)
    np.testing.assert_allclose(np.asarray(loss3), np.asarray(ref3), rtol=5e-4, atol=1e-4)

    print("KERNEL_OK")
</pallas_src>

<mosaic_0001>
module attributes {stable_mosaic.version = 11 : i64} {
  func.func @_distill_kl_kernel(%arg0: i32, %arg1: memref<16x1000xf32, #tpu.memory_space<vmem>>, %arg2: memref<16x1000xf32, #tpu.memory_space<vmem>>, %arg3: memref<16x1xf32, #tpu.memory_space<vmem>>) attributes {dimension_semantics = [#tpu.dimension_semantics<parallel>], iteration_bounds = array<i64: 1>, scalar_prefetch = 0 : i64, scratch_operands = 0 : i64, tpu.core_type = #tpu.core_type<tc>, window_params = [{transform_indices = @transform_0, window_bounds = array<i64: 16, 1000>}, {transform_indices = @transform_1, window_bounds = array<i64: 16, 1000>}, {transform_indices = @transform_2, window_bounds = array<i64: 16, 1>}]} {
    %c0 = arith.constant 0 : index
    %c0_0 = arith.constant 0 : index
    %0 = vector.load %arg1[%c0, %c0_0] : memref<16x1000xf32, #tpu.memory_space<vmem>>, vector<16x1000xf32>
    %c0_1 = arith.constant 0 : index
    %c0_2 = arith.constant 0 : index
    %1 = vector.load %arg2[%c0_1, %c0_2] : memref<16x1000xf32, #tpu.memory_space<vmem>>, vector<16x1000xf32>
    %cst = arith.constant dense<0xFF800000> : vector<16xf32>
    %2 = vector.multi_reduction <maximumf>, %0, %cst [1] : vector<16x1000xf32> to vector<16xf32>
    %3 = vector.shape_cast %2 : vector<16xf32> to vector<16x1xf32>
    %cst_3 = arith.constant dense<0xFF800000> : vector<16xf32>
    %4 = vector.multi_reduction <maximumf>, %1, %cst_3 [1] : vector<16x1000xf32> to vector<16xf32>
    %5 = vector.shape_cast %4 : vector<16xf32> to vector<16x1xf32>
    %6 = vector.broadcast %3 : vector<16x1xf32> to vector<16x1000xf32>
    %7 = arith.subf %0, %6 : vector<16x1000xf32>
    %cst_4 = arith.constant 2.500000e-01 : f32
    %8 = vector.broadcast %cst_4 : f32 to vector<16x1000xf32>
    %9 = arith.mulf %7, %8 : vector<16x1000xf32>
    %10 = vector.broadcast %5 : vector<16x1xf32> to vector<16x1000xf32>
    %11 = arith.subf %1, %10 : vector<16x1000xf32>
    %cst_5 = arith.constant 2.500000e-01 : f32
    %12 = vector.broadcast %cst_5 : f32 to vector<16x1000xf32>
    %13 = arith.mulf %11, %12 : vector<16x1000xf32>
    %14 = math.exp %13 : vector<16x1000xf32>
    %15 = math.exp %9 : vector<16x1000xf32>
    %cst_6 = arith.constant dense<0.000000e+00> : vector<16xf32>
    %16 = vector.multi_reduction <add>, %15, %cst_6 [1] : vector<16x1000xf32> to vector<16xf32>
    %17 = vector.shape_cast %16 : vector<16xf32> to vector<16x1xf32>
    %cst_7 = arith.constant dense<0.000000e+00> : vector<16xf32>
    %18 = vector.multi_reduction <add>, %14, %cst_7 [1] : vector<16x1000xf32> to vector<16xf32>
    %19 = vector.shape_cast %18 : vector<16xf32> to vector<16x1xf32>
    %20 = arith.subf %13, %9 : vector<16x1000xf32>
    %21 = arith.mulf %14, %20 : vector<16x1000xf32>
    %cst_8 = arith.constant dense<0.000000e+00> : vector<16xf32>
    %22 = vector.multi_reduction <add>, %21, %cst_8 [1] : vector<16x1000xf32> to vector<16xf32>
    %23 = vector.shape_cast %22 : vector<16xf32> to vector<16x1xf32>
    %24 = arith.divf %23, %19 : vector<16x1xf32>
    %25 = math.log %19 : vector<16x1xf32>
    %26 = arith.subf %24, %25 : vector<16x1xf32>
    %27 = math.log %17 : vector<16x1xf32>
    %28 = arith.addf %26, %27 : vector<16x1xf32>
    %c0_9 = arith.constant 0 : index
    %c0_10 = arith.constant 0 : index
    %29 = vector.load %arg3[%c0_9, %c0_10] : memref<16x1xf32, #tpu.memory_space<vmem>>, vector<16x1xf32>
    tpu.vector_store %arg3[%c0_9, %c0_10], %28 {strides = array<i32>} : memref<16x1xf32, #tpu.memory_space<vmem>>, vector<16x1xf32>,
    return
  }
  func.func @transform_0(%arg0: i32) -> (i32, i32) {
    %c0_i32 = arith.constant 0 : i32
    %c0_i32_0 = arith.constant 0 : i32
    return %arg0, %c0_i32 : i32, i32
  }
  func.func @transform_1(%arg0: i32) -> (i32, i32) {
    %c0_i32 = arith.constant 0 : i32
    %c0_i32_0 = arith.constant 0 : i32
    return %arg0, %c0_i32 : i32, i32
  }
  func.func @transform_2(%arg0: i32) -> (i32, i32) {
    %c0_i32 = arith.constant 0 : i32
    %c0_i32_0 = arith.constant 0 : i32
    return %arg0, %c0_i32 : i32, i32
  }
}

</mosaic_0001>

<llo_original>
// kernel: tpu_custom_call.1
$region0: #{tpu_custom_call.1}
  #allocation0 [shape = 'u32[]', space=smem, size = 0x4, offset = 0x4, fixed_abs, tag = 'smem constant byte address 0x4 - core index']
  #allocation1 [shape = 'u32[144,128]{1,0:T(1,128)}', space=vmem, size = 0x12000, scoped, tag = 'internal scratch']
  %s0 = inlined_call_operand.hbm [shape: f32[16,1000], index: 0, kind: input, shape index: {}]
  %s1 = inlined_call_operand.hbm [shape: f32[16,1000], index: 1, kind: input, shape index: {}]
  %s2 = inlined_call_operand.vmem [shape: f32[16,1], index: 2, kind: output, shape index: {}]
  %s3 = sld [smem:[#allocation0]]
  $region26: #{tpu_custom_call.1} parent=0
    _
  %s5 = ssub.s32 1, %s3
  %s6 = scalar_select 0, %s5, %s3
  $region1: #{tpu_custom_call.1} parent=0
    #allocation2 [shape = 'u8[65536]{0}', space=vmem, size = 0x10000, scoped, tag = 'input window, operand 0, single buffered']
    #allocation3 [shape = 's32[1]{0}', space=sflag, size = 0x4, scoped, tag = 'scoped memory for tpu_custom_call.1']
    #allocation4 [shape = 'u8[65536]{0}', space=vmem, size = 0x10000, scoped, tag = 'input window, operand 1, single buffered']
    #allocation5 [shape = 's32[1]{0}', space=sflag, size = 0x4, scoped, tag = 'scoped memory for tpu_custom_call.1']
    %7 = vsyncpa [#allocation3], 0
    %8 = vsyncpa [#allocation5], 0
    // Predicated region
    $region2: #{tpu_custom_call.1} parent=1 // pred_check
      _
    $region3: #{tpu_custom_call.1} parent=1 // pred_check_branch
      %10 = sbr.rel (0) target = $region5
    $region4: #{tpu_custom_call.1} parent=1 // pred_region
      %s12 = ssub.s32 2048, 2048
      %13 = vsyncadd [#allocation3], %s12
      %s14 = sshll.u32 [#allocation2], 4
      %s15 = int_to_ptr.vmem [resolvable:$true] %s14
      %20 = dma.hbm_to_vmem [thread:$0]  %s0, 2048, %s15, [#allocation3], 1024, 1024, 64
    $region5: #{tpu_custom_call.1} parent=1 // pred_fallthru
      _
    // Predicated region
    $region6: #{tpu_custom_call.1} parent=1 // pred_check
      _
    $region7: #{tpu_custom_call.1} parent=1 // pred_check_branch
      %22 = sbr.rel (0) target = $region9
    $region8: #{tpu_custom_call.1} parent=1 // pred_region
      %s24 = ssub.s32 2048, 2048
      %25 = vsyncadd [#allocation5], %s24
      %s26 = sshll.u32 [#allocation4], 4
      %s27 = int_to_ptr.vmem [resolvable:$true] %s26
      %32 = dma.hbm_to_vmem [thread:$0]  %s1, 2048, %s27, [#allocation5], 1024, 1024, 64
    $region9: #{tpu_custom_call.1} parent=1 // pred_fallthru
      _
    // Predicated region
    $region10: #{tpu_custom_call.1} parent=1 // pred_check
      _
    $region11: #{tpu_custom_call.1} parent=1 // pred_check_branch
      %34 = sbr.rel (0) target = $region13
    $region12: #{tpu_custom_call.1} parent=1 // pred_region
      %35 = dma.done [#allocation3], 2048
    $region13: #{tpu_custom_call.1} parent=1 // pred_fallthru
      _
    // Predicated region
    $region14: #{tpu_custom_call.1} parent=1 // pred_check
      _
    $region15: #{tpu_custom_call.1} parent=1 // pred_check_branch
      %37 = sbr.rel (0) target = $region17
    $region16: #{tpu_custom_call.1} parent=1 // pred_region
      %38 = dma.done [#allocation5], 2048
    $region17: #{tpu_custom_call.1} parent=1 // pred_fallthru
      _
    %v39 = vld [vmem:[#allocation2] sm:$0xff]
    %v40 = vld [vmem:[#allocation2 + $0x8] sm:$0xff]
    %v41 = vld [vmem:[#allocation2 + $0x10] sm:$0xff]
    %v42 = vld [vmem:[#allocation2 + $0x18] sm:$0xff]
    %v43 = vld [vmem:[#allocation2 + $0x20] sm:$0xff]
    %v44 = vld [vmem:[#allocation2 + $0x28] sm:$0xff]
    %v45 = vld [vmem:[#allocation2 + $0x30] sm:$0xff]
    %v46 = vld [vmem:[#allocation2 + $0x38] sm:$0xff]
    %v47 = vld [vmem:[#allocation2 + $0x40] sm:$0xff]
    %v48 = vld [vmem:[#allocation2 + $0x48] sm:$0xff]
    %v49 = vld [vmem:[#allocation2 + $0x50] sm:$0xff]
    %v50 = vld [vmem:[#allocation2 + $0x58] sm:$0xff]
    %v51 = vld [vmem:[#allocation2 + $0x60] sm:$0xff]
    %v52 = vld [vmem:[#allocation2 + $0x68] sm:$0xff]
    %v53 = vld [vmem:[#allocation2 + $0x70] sm:$0xff]
    %v54 = vld [vmem:[#allocation2 + $0x78] sm:$0xff]
    %v55 = vld [vmem:[#allocation4] sm:$0xff]
    %v56 = vld [vmem:[#allocation4 + $0x8] sm:$0xff]
    %v57 = vld [vmem:[#allocation4 + $0x10] sm:$0xff]
    %v58 = vld [vmem:[#allocation4 + $0x18] sm:$0xff]
    %v59 = vld [vmem:[#allocation4 + $0x20] sm:$0xff]
    %v60 = vld [vmem:[#allocation4 + $0x28] sm:$0xff]
    %v61 = vld [vmem:[#allocation4 + $0x30] sm:$0xff]
    %v62 = vld [vmem:[#allocation4 + $0x38] sm:$0xff]
    %v63 = vld [vmem:[#allocation4 + $0x40] sm:$0xff]
    %v64 = vld [vmem:[#allocation4 + $0x48] sm:$0xff]
    %v65 = vld [vmem:[#allocation4 + $0x50] sm:$0xff]
    %v66 = vld [vmem:[#allocation4 + $0x58] sm:$0xff]
    %v67 = vld [vmem:[#allocation4 + $0x60] sm:$0xff]
    %v68 = vld [vmem:[#allocation4 + $0x68] sm:$0xff]
    %v69 = vld [vmem:[#allocation4 + $0x70] sm:$0xff]
    %v70 = vld [vmem:[#allocation4 + $0x78] sm:$0xff]
    %v71 = vmax.f32 %v39, %v41
    %v72 = vmax.f32 %v40, %v42
    %v73 = vmax.f32 %v71, %v43
    %v74 = vmax.f32 %v72, %v44
    %v75 = vmax.f32 %v73, %v45
    %vm76 = vcmask 850944
    %v77 = vsel %vm76, %v46, -inf
    %v78 = vmax.f32 %v74, %v77
    %v79 = vmax.f32 %v75, %v78
    %80 = vmax.xlane.f32.xlu0 %v79
    %v81 = vpop.xlane.xlu0 %80
    %v82 = vmax.f32 %v47, %v49
    %v83 = vmax.f32 %v48, %v50
    %v84 = vmax.f32 %v82, %v51
    %v85 = vmax.f32 %v83, %v52
    %v86 = vmax.f32 %v84, %v53
    %v87 = vsel %vm76, %v54, -inf
    %v88 = vmax.f32 %v85, %v87
    %v89 = vmax.f32 %v86, %v88
    %90 = vmax.xlane.f32.xlu0 %v89
    %v91 = vpop.xlane.xlu0 %90
    %v92 = vmax.f32 %v55, %v57
    %v93 = vmax.f32 %v56, %v58
    %v94 = vmax.f32 %v92, %v59
    %v95 = vmax.f32 %v93, %v60
    %v96 = vmax.f32 %v94, %v61
    %v97 = vsel %vm76, %v62, -inf
    %v98 = vmax.f32 %v95, %v97
    %v99 = vmax.f32 %v96, %v98
    %100 = vmax.xlane.f32.xlu0 %v99
    %v101 = vpop.xlane.xlu0 %100
    %v102 = vmax.f32 %v63, %v65
    %v103 = vmax.f32 %v64, %v66
    %v104 = vmax.f32 %v102, %v67
    %v105 = vmax.f32 %v103, %v68
    %v106 = vmax.f32 %v104, %v69
    %v107 = vsel %vm76, %v70, -inf
    %v108 = vmax.f32 %v105, %v107
    %v109 = vmax.f32 %v106, %v108
    %110 = vmax.xlane.f32.xlu0 %v109
    %v111 = vpop.xlane.xlu0 %110
    %v112 = vsub.f32 %v39, %v81
    %v113 = vsub.f32 %v40, %v81
    %v114 = vsub.f32 %v41, %v81
    %v115 = vsub.f32 %v42, %v81
    %v116 = vsub.f32 %v43, %v81
    %v117 = vsub.f32 %v44, %v81
    %v118 = vsub.f32 %v45, %v81
    %v119 = vsub.f32 %v46, %v81
    %v120 = vsub.f32 %v47, %v91
    %v121 = vsub.f32 %v48, %v91
    %v122 = vsub.f32 %v49, %v91
    %v123 = vsub.f32 %v50, %v91
    %v124 = vsub.f32 %v51, %v91
    %v125 = vsub.f32 %v52, %v91
    %v126 = vsub.f32 %v53, %v91
    %v127 = vsub.f32 %v54, %v91
    %v128 = vmul.f32 %v112, 0.25
    %v129 = vmul.f32 %v113, 0.25
    %v130 = vmul.f32 %v114, 0.25
    %v131 = vmul.f32 %v115, 0.25
    %v132 = vmul.f32 %v116, 0.25
    %v133 = vmul.f32 %v117, 0.25
    %v134 = vmul.f32 %v118, 0.25
    %v135 = vmul.f32 %v119, 0.25
    %v136 = vmul.f32 %v120, 0.25
    %v137 = vmul.f32 %v121, 0.25
    %v138 = vmul.f32 %v122, 0.25
    %v139 = vmul.f32 %v123, 0.25
    %v140 = vmul.f32 %v124, 0.25
    %v141 = vmul.f32 %v125, 0.25
    %v142 = vmul.f32 %v126, 0.25
    %v143 = vmul.f32 %v127, 0.25
    %v144 = vsub.f32 %v55, %v101
    %v145 = vsub.f32 %v56, %v101
    %v146 = vsub.f32 %v57, %v101
    %v147 = vsub.f32 %v58, %v101
    %v148 = vsub.f32 %v59, %v101
    %v149 = vsub.f32 %v60, %v101
    %v150 = vsub.f32 %v61, %v101
    %v151 = vsub.f32 %v62, %v101
    %v152 = vsub.f32 %v63, %v111
    %v153 = vsub.f32 %v64, %v111
    %v154 = vsub.f32 %v65, %v111
    %v155 = vsub.f32 %v66, %v111
    %v156 = vsub.f32 %v67, %v111
    %v157 = vsub.f32 %v68, %v111
    %v158 = vsub.f32 %v69, %v111
    %v159 = vsub.f32 %v70, %v111
    %v160 = vmul.f32 %v144, 0.25
    %v161 = vmul.f32 %v145, 0.25
    %v162 = vmul.f32 %v146, 0.25
    %v163 = vmul.f32 %v147, 0.25
    %v164 = vmul.f32 %v148, 0.25
    %v165 = vmul.f32 %v149, 0.25
    %v166 = vmul.f32 %v150, 0.25
    %v167 = vmul.f32 %v151, 0.25
    %v168 = vmul.f32 %v152, 0.25
    %v169 = vmul.f32 %v153, 0.25
    %v170 = vmul.f32 %v154, 0.25
    %v171 = vmul.f32 %v155, 0.25
    %v172 = vmul.f32 %v156, 0.25
    %v173 = vmul.f32 %v157, 0.25
    %v174 = vmul.f32 %v158, 0.25
    %v175 = vmul.f32 %v159, 0.25
    %v176 = vmul.f32 %v160, 1.442695
    %v177 = vpow.pop %v176
    %v178 = vmul.f32 %v161, 1.442695
    %v179 = vpow.pop %v178
    %v180 = vmul.f32 %v162, 1.442695
    %v181 = vpow.pop %v180
    %v182 = vmul.f32 %v163, 1.442695
    %v183 = vpow.pop %v182
    %v184 = vmul.f32 %v164, 1.442695
    %v185 = vpow.pop %v184
    %v186 = vmul.f32 %v165, 1.442695
    %v187 = vpow.pop %v186
    %v188 = vmul.f32 %v166, 1.442695
    %v189 = vpow.pop %v188
    %v190 = vmul.f32 %v167, 1.442695
    %v191 = vpow.pop %v190
    %v192 = vmul.f32 %v168, 1.442695
    %v193 = vpow.pop %v192
    %v194 = vmul.f32 %v169, 1.442695
    %v195 = vpow.pop %v194
    %v196 = vmul.f32 %v170, 1.442695
    %v197 = vpow.pop %v196
    %v198 = vmul.f32 %v171, 1.442695
    %v199 = vpow.pop %v198
    %v200 = vmul.f32 %v172, 1.442695
    %v201 = vpow.pop %v200
    %v202 = vmul.f32 %v173, 1.442695
    %v203 = vpow.pop %v202
    %v204 = vmul.f32 %v174, 1.442695
    %v205 = vpow.pop %v204
    %v206 = vmul.f32 %v175, 1.442695
    %v207 = vpow.pop %v206
    %v208 = vmul.f32 %v128, 1.442695
    %v209 = vpow.pop %v208
    %v210 = vmul.f32 %v129, 1.442695
    %v211 = vpow.pop %v210
    %v212 = vmul.f32 %v130, 1.442695
    %v213 = vpow.pop %v212
    %v214 = vmul.f32 %v131, 1.442695
    %v215 = vpow.pop %v214
    %v216 = vmul.f32 %v132, 1.442695
    %v217 = vpow.pop %v216
    %v218 = vmul.f32 %v133, 1.442695
    %v219 = vpow.pop %v218
    %v220 = vmul.f32 %v134, 1.442695
    %v221 = vpow.pop %v220
    %v222 = vmul.f32 %v135, 1.442695
    %v223 = vpow.pop %v222
    %v224 = vmul.f32 %v136, 1.442695
    %v225 = vpow.pop %v224
    %v226 = vmul.f32 %v137, 1.442695
    %v227 = vpow.pop %v226
    %v228 = vmul.f32 %v138, 1.442695
    %v229 = vpow.pop %v228
    %v230 = vmul.f32 %v139, 1.442695
    %v231 = vpow.pop %v230
    %v232 = vmul.f32 %v140, 1.442695
    %v233 = vpow.pop %v232
    %v234 = vmul.f32 %v141, 1.442695
    %v235 = vpow.pop %v234
    %v236 = vmul.f32 %v142, 1.442695
    %v237 = vpow.pop %v236
    %v238 = vmul.f32 %v143, 1.442695
    %v239 = vpow.pop %v238
    %v240 = vadd.f32 %v209, %v211
    %v241 = vadd.f32 %v240, %v213
    %v242 = vadd.f32 %v241, %v215
    %v243 = vadd.f32 %v242, %v217
    %v244 = vadd.f32 %v243, %v219
    %v245 = vadd.f32 %v244, %v221
    %v246 = vsel %vm76, %v223, 0.0
    %v247 = vadd.f32 %v245, %v246
    %248 = vadd.xlane.f32.xlu0 %v247
    %v249 = vpop.xlane.xlu0 %248
    %v250 = vadd.f32 %v225, %v227
    %v251 = vadd.f32 %v250, %v229
    %v252 = vadd.f32 %v251, %v231
    %v253 = vadd.f32 %v252, %v233
    %v254 = vadd.f32 %v253, %v235
    %v255 = vadd.f32 %v254, %v237
    %v256 = vsel %vm76, %v239, 0.0
    %v257 = vadd.f32 %v255, %v256
    %258 = vadd.xlane.f32.xlu0 %v257
    %v259 = vpop.xlane.xlu0 %258
    %v260 = vadd.f32 %v177, %v179
    %v261 = vadd.f32 %v260, %v181
    %v262 = vadd.f32 %v261, %v183
    %v263 = vadd.f32 %v262, %v185
    %v264 = vadd.f32 %v263, %v187
    %v265 = vadd.f32 %v264, %v189
    %v266 = vsel %vm76, %v191, 0.0
    %v267 = vadd.f32 %v265, %v266
    %268 = vadd.xlane.f32.xlu0 %v267
    %v269 = vpop.xlane.xlu0 %268
    %v270 = vadd.f32 %v193, %v195
    %v271 = vadd.f32 %v270, %v197
    %v272 = vadd.f32 %v271, %v199
    %v273 = vadd.f32 %v272, %v201
    %v274 = vadd.f32 %v273, %v203
    %v275 = vadd.f32 %v274, %v205
    %v276 = vsel %vm76, %v207, 0.0
    %v277 = vadd.f32 %v275, %v276
    %278 = vadd.xlane.f32.xlu0 %v277
    %v279 = vpop.xlane.xlu0 %278
    %v280 = vsub.f32 %v160, %v128
    %v281 = vsub.f32 %v161, %v129
    %v282 = vsub.f32 %v162, %v130
    %v283 = vsub.f32 %v163, %v131
    %v284 = vsub.f32 %v164, %v132
    %v285 = vsub.f32 %v165, %v133
    %v286 = vsub.f32 %v166, %v134
    %v287 = vsub.f32 %v167, %v135
    %v288 = vsub.f32 %v168, %v136
    %v289 = vsub.f32 %v169, %v137
    %v290 = vsub.f32 %v170, %v138
    %v291 = vsub.f32 %v171, %v139
    %v292 = vsub.f32 %v172, %v140
    %v293 = vsub.f32 %v173, %v141
    %v294 = vsub.f32 %v174, %v142
    %v295 = vsub.f32 %v175, %v143
    %v296 = vmul.f32 %v177, %v280
    %v297 = vmul.f32 %v179, %v281
    %v298 = vmul.f32 %v181, %v282
    %v299 = vmul.f32 %v183, %v283
    %v300 = vmul.f32 %v185, %v284
    %v301 = vmul.f32 %v187, %v285
    %v302 = vmul.f32 %v189, %v286
    %v303 = vmul.f32 %v191, %v287
    %v304 = vmul.f32 %v193, %v288
    %v305 = vmul.f32 %v195, %v289
    %v306 = vmul.f32 %v197, %v290
    %v307 = vmul.f32 %v199, %v291
    %v308 = vmul.f32 %v201, %v292
    %v309 = vmul.f32 %v203, %v293
    %v310 = vmul.f32 %v205, %v294
    %v311 = vmul.f32 %v207, %v295
    %v312 = vadd.f32 %v296, %v297
    %v313 = vadd.f32 %v312, %v298
    %v314 = vadd.f32 %v313, %v299
    %v315 = vadd.f32 %v314, %v300
    %v316 = vadd.f32 %v315, %v301
    %v317 = vadd.f32 %v316, %v302
    %v318 = vsel %vm76, %v303, 0.0
    %v319 = vadd.f32 %v317, %v318
    %320 = vadd.xlane.f32.xlu0 %v319
    %v321 = vpop.xlane.xlu0 %320
    %v322 = vadd.f32 %v304, %v305
    %v323 = vadd.f32 %v322, %v306
    %v324 = vadd.f32 %v323, %v307
    %v325 = vadd.f32 %v324, %v308
    %v326 = vadd.f32 %v325, %v309
    %v327 = vadd.f32 %v326, %v310
    %v328 = vsel %vm76, %v311, 0.0
    %v329 = vadd.f32 %v327, %v328
    %330 = vadd.xlane.f32.xlu0 %v329
    %v331 = vpop.xlane.xlu0 %330
    %v332 = vrcp.pop %v269
    %v333 = vmul.f32 %v321, %v332
    %v334 = vrcp.pop %v279
    %v335 = vmul.f32 %v331, %v334
    %v336 = vlog2.pop %v269
    %v337 = vmul.f32 %v336, 0.6931472
    %v338 = vlog2.pop %v279
    %v339 = vmul.f32 %v338, 0.6931472
    %v340 = vsub.f32 %v333, %v337
    %v341 = vsub.f32 %v335, %v339
    %v342 = vlog2.pop %v249
    %v343 = vmul.f32 %v342, 0.6931472
    %v344 = vlog2.pop %v259
    %v345 = vmul.f32 %v344, 0.6931472
    %v346 = vadd.f32 %v340, %v343
    %v347 = vadd.f32 %v341, %v345
    %vm348 = vcmask 7168
    %349 = vst.msk [vmem:[%s2] sm:$0xff] %vm348, %v346
    %350 = vst.msk [vmem:[%s2 + $0x8] sm:$0xff] %vm348, %v347
    // Predicated region
    $region18: #{tpu_custom_call.1} parent=1 // pred_check
      _
    $region19: #{tpu_custom_call.1} parent=1 // pred_check_branch
      %352 = sbr.rel (0) target = $region21
    $region20: #{tpu_custom_call.1} parent=1 // pred_region
      _
    $region21: #{tpu_custom_call.1} parent=1 // pred_fallthru
      _
    // Predicated region
    $region22: #{tpu_custom_call.1} parent=1 // pred_check
      _
    $region23: #{tpu_custom_call.1} parent=1 // pred_check_branch
      %354 = sbr.rel (0) target = $region25
    $region24: #{tpu_custom_call.1} parent=1 // pred_region
      _
    $region25: #{tpu_custom_call.1} parent=1 // pred_fallthru
      _
    %355 = vsyncpa [#allocation3], 1
    %356 = vsyncpa [#allocation5], 1

</llo_original>
